<compile_context>
chip_gen: v6e
topology: v6e:2x2x1
jax: 0.10.0
libtpu: 0.0.40
codegen_flags: <defaults>
</compile_context>

<pallas_src>
import functools

import jax
import jax.numpy as jnp
from jax.experimental import pallas as pl
from jax.experimental.pallas import tpu as pltpu


def _round_up(x, m):
    return ((x + m - 1) // m) * m


def _round_down(x, m):
    return (x // m) * m


def _focal_modulator(one_minus_p, gamma):
    """(1 - p) ** gamma with an integer-gamma fast path (pure VPU multiplies)."""
    g = float(gamma)
    gi = int(g)
    if g == gi and 0 <= gi <= 4:
        if gi == 0:
            return jnp.ones_like(one_minus_p)
        r = one_minus_p
        for _ in range(gi - 1):
            r = r * one_minus_p
        return r
    # Non-integer gamma: clamp base >= 0 so lax.pow (log/exp) never sees a
    # negative base from FP rounding.
    return jnp.maximum(one_minus_p, 0.0) ** g


def _focal_loss_kernel(logits_ref, tgt_ref, out_ref, acc_ref, *,
                       gamma, n_valid, tile_rows, tiles_per_split):
    # logits_ref: (TN, C), tgt_ref: (TN, 1) int32,
    # out_ref: (8, 128) f32 partial tile for this split, acc_ref: (1, 1) f32.
    c = pl.program_id(0)   # core / row-range split (parallel)
    i = pl.program_id(1)   # row tile within the split (arbitrary, carries acc)

    @pl.when(i == 0)
    def _():
        acc_ref[...] = jnp.zeros_like(acc_ref)

    x = logits_ref[...].astype(jnp.float32)                       # (TN, C)
    t = tgt_ref[...]                                              # (TN, 1) int32

    # Numerically-stable log-sum-exp per row.
    m = jnp.max(x, axis=-1, keepdims=True)                        # (TN, 1)
    lse = m + jnp.log(jnp.sum(jnp.exp(x - m), axis=-1, keepdims=True))

    # Gather the target logit via lane-iota one-hot (no dynamic gather on TPU).
    col = jax.lax.broadcasted_iota(jnp.int32, x.shape, 1)         # (TN, C)
    onehot = (col == t).astype(jnp.float32)
    tgt_logit = jnp.sum(x * onehot, axis=-1, keepdims=True)       # (TN, 1)

    # Per-sample CE (reduction='none', weight=None), clamped >= 0 so the focal
    # power never sees a negative base and p = exp(-ce) stays <= 1.
    ce = jnp.maximum(lse - tgt_logit, 0.0)                        # (TN, 1)
    p = jnp.exp(-ce)
    loss = _focal_modulator(1.0 - p, gamma) * ce                  # (TN, 1)

    # Mask rows that are padding (global row index >= true N).
    row = jax.lax.broadcasted_iota(jnp.int32, loss.shape, 0)      # (TN, 1)
    global_row = (c * tiles_per_split + i) * tile_rows + row
    loss = jnp.where(global_row < n_valid, loss, 0.0)

    acc_ref[...] += jnp.sum(loss, axis=0, keepdims=True)          # (1, 1)

    # Flush the split's partial sum once, at the last inner step.
    @pl.when(i == pl.num_programs(1) - 1)
    def _():
        r8 = jax.lax.broadcasted_iota(jnp.int32, out_ref.shape, 0)
        l128 = jax.lax.broadcasted_iota(jnp.int32, out_ref.shape, 1)
        out_ref[...] = jnp.where((r8 == 0) & (l128 == 0), acc_ref[...], 0.0)


def focal_loss_pallas(output_logits, target, *, gamma=0.0, weight=None,
                      row_tile=None):
    """Pallas equivalent of FocalLoss(gamma=gamma, weight=None).forward."""
    assert gamma >= 0
    # TODO(synk): per-class `weight` rescaling of the CE term is not wired in
    # (module default is weight=None); add a (C,) weight input if needed.
    assert weight is None

    N, C = output_logits.shape
    itemsize = jnp.dtype(output_logits.dtype).itemsize

    # --- Row tile: multiple of 8, sized so the double-buffered input tile plus
    # the in-kernel f32 temporaries (~3 f32 copies of the tile) stay within a
    # conservative ~16 MiB budget (safe under every generation's scoped VMEM).
    if row_tile is None:
        vmem_budget = 16 * 1024 * 1024
        bytes_per_row = 2 * C * itemsize + 3 * C * 4
        max_rows_by_vmem = max(8, _round_down(vmem_budget // bytes_per_row, 8))
        row_tile = max(8, min(2048, _round_up(N, 8), max_rows_by_vmem))
    assert row_tile % 8 == 0 and row_tile > 0
    TN = row_tile

    total_tiles = pl.cdiv(N, TN)
    # Split rows across TensorCores when there is more than one tile (2x on
    # v7x; harmless sequential loop on single-TC v5e/v6e).
    NSPLIT = 2 if total_tiles >= 2 else 1
    tiles_per_split = pl.cdiv(total_tiles, NSPLIT)
    N_pad = NSPLIT * tiles_per_split * TN

    x = output_logits                         # keep source dtype (bf16 ok)
    tgt = target.astype(jnp.int32).reshape(N, 1)
    if N_pad != N:
        x = jnp.pad(x, ((0, N_pad - N), (0, 0)))
        tgt = jnp.pad(tgt, ((0, N_pad - N), (0, 0)))

    kernel = functools.partial(
        _focal_loss_kernel,
        gamma=float(gamma),
        n_valid=N,
        tile_rows=TN,
        tiles_per_split=tiles_per_split,
    )

    partials = pl.pallas_call(
        kernel,
        out_shape=jax.ShapeDtypeStruct((NSPLIT * 8, 128), jnp.float32),
        grid_spec=pltpu.PrefetchScalarGridSpec(
            num_scalar_prefetch=0,
            grid=(NSPLIT, tiles_per_split),
            in_specs=[
                pl.BlockSpec((TN, C), lambda c, i: (c * tiles_per_split + i, 0)),
                pl.BlockSpec((TN, 1), lambda c, i: (c * tiles_per_split + i, 0)),
            ],
            out_specs=pl.BlockSpec((8, 128), lambda c, i: (c, 0)),
            scratch_shapes=[pltpu.VMEM((1, 1), jnp.float32)],
        ),
        compiler_params=pltpu.CompilerParams(
            dimension_semantics=("parallel", "arbitrary")),
    )(x, tgt)

    # Partial tiles are zero except at [c*8, 0]; sum all and divide by true N.
    return jnp.sum(partials) / jnp.float32(N)


def _focal_loss_ref(output_logits, target, gamma):
    # Pure-JAX reference (mirrors F.cross_entropy(reduction='none') + focal_loss).
    x = output_logits.astype(jnp.float32)
    logp = jax.nn.log_softmax(x, axis=-1)
    ce = -jnp.take_along_axis(logp, target[:, None].astype(jnp.int32), axis=-1)[:, 0]
    p = jnp.exp(-ce)
    return jnp.mean((1.0 - p) ** gamma * ce)


if __name__ == "__main__":
    key = jax.random.PRNGKey(0)

    # --- Case 1: small single-tile case (matches the original toy shape).
    k1, k2 = jax.random.split(key)
    N, C = 8, 16
    logits = jax.random.normal(k1, (N, C), dtype=jnp.float32)
    target = jax.random.randint(k2, (N,), 0, C, dtype=jnp.int32)
    out = jax.block_until_ready(focal_loss_pallas(logits, target, gamma=2.0))
    ref = _focal_loss_ref(logits, target, 2.0)
    assert jnp.allclose(out, ref, rtol=1e-5, atol=1e-6), (out, ref)

    # --- Case 2: multi-tile + core-split + padded/masked rows (N % tile != 0),
    # integer and non-integer gamma, plus a bf16-input path.
    k3, k4 = jax.random.split(k1)
    N2, C2 = 40, 16
    logits2 = jax.random.normal(k3, (N2, C2), dtype=jnp.float32)
    target2 = jax.random.randint(k4, (N2,), 0, C2, dtype=jnp.int32)

    for g in (0.0, 2.0, 0.5):
        out2 = jax.block_until_ready(
            focal_loss_pallas(logits2, target2, gamma=g, row_tile=8))
        ref2 = _focal_loss_ref(logits2, target2, g)
        assert jnp.allclose(out2, ref2, rtol=1e-5, atol=1e-6), (g, out2, ref2)

    logits2_bf16 = logits2.astype(jnp.bfloat16)
    out3 = jax.block_until_ready(
        focal_loss_pallas(logits2_bf16, target2, gamma=2.0, row_tile=8))
    ref3 = _focal_loss_ref(logits2_bf16, target2, 2.0)
    assert jnp.allclose(out3, ref3, rtol=1e-4, atol=1e-5), (out3, ref3)

    # --- Case 3: auto-tiled larger case exercising the default row_tile path.
    k5, k6 = jax.random.split(k3)
    N3, C3 = 1024, 32
    logits3 = jax.random.normal(k5, (N3, C3), dtype=jnp.float32)
    target3 = jax.random.randint(k6, (N3,), 0, C3, dtype=jnp.int32)
    out4 = jax.block_until_ready(focal_loss_pallas(logits3, target3, gamma=2.0))
    ref4 = _focal_loss_ref(logits3, target3, 2.0)
    assert jnp.allclose(out4, ref4, rtol=1e-5, atol=1e-6), (out4, ref4)

    print("KERNEL_OK")
</pallas_src>

<mosaic_0001>
module attributes {stable_mosaic.version = 11 : i64} {
  func.func @_focal_loss_kernel(%arg0: i32, %arg1: i32, %arg2: memref<8x16xf32, #tpu.memory_space<vmem>>, %arg3: memref<8x1xi32, #tpu.memory_space<vmem>>, %arg4: memref<8x128xf32, #tpu.memory_space<vmem>>, %arg5: memref<1x1xf32, #tpu.memory_space<vmem>>) attributes {dimension_semantics = [#tpu.dimension_semantics<parallel>, #tpu.dimension_semantics<arbitrary>], iteration_bounds = array<i64: 1, 1>, scalar_prefetch = 0 : i64, scratch_operands = 1 : i64, tpu.core_type = #tpu.core_type<tc>, window_params = [{transform_indices = @transform_0, window_bounds = array<i64: 8, 16>}, {transform_indices = @transform_1, window_bounds = array<i64: 8, 1>}, {transform_indices = @transform_2, window_bounds = array<i64: 8, 128>}]} {
    %c0_i32 = arith.constant 0 : i32
    %0 = arith.cmpi eq, %arg1, %c0_i32 : i32
    %1 = arith.extui %0 : i1 to i32
    %c0_i32_0 = arith.constant 0 : i32
    %2 = arith.cmpi ne, %1, %c0_i32_0 : i32
    scf.if %2 {
      %cst_18 = arith.constant 0.000000e+00 : f32
      %50 = vector.broadcast %cst_18 : f32 to vector<1x1xf32>
      %c0_19 = arith.constant 0 : index
      %c0_20 = arith.constant 0 : index
      %51 = vector.load %arg5[%c0_19, %c0_20] : memref<1x1xf32, #tpu.memory_space<vmem>>, vector<1x1xf32>
      tpu.vector_store %arg5[%c0_19, %c0_20], %50 {strides = array<i32>} : memref<1x1xf32, #tpu.memory_space<vmem>>, vector<1x1xf32>,
    } else {
    }
    %c0 = arith.constant 0 : index
    %c0_1 = arith.constant 0 : index
    %3 = vector.load %arg2[%c0, %c0_1] : memref<8x16xf32, #tpu.memory_space<vmem>>, vector<8x16xf32>
    %c0_2 = arith.constant 0 : index
    %c0_3 = arith.constant 0 : index
    %4 = vector.load %arg3[%c0_2, %c0_3] : memref<8x1xi32, #tpu.memory_space<vmem>>, vector<8x1xi32>
    %cst = arith.constant dense<0xFF800000> : vector<8xf32>
    %5 = vector.multi_reduction <maximumf>, %3, %cst [1] : vector<8x16xf32> to vector<8xf32>
    %6 = vector.shape_cast %5 : vector<8xf32> to vector<8x1xf32>
    %7 = vector.broadcast %6 : vector<8x1xf32> to vector<8x16xf32>
    %8 = arith.subf %3, %7 : vector<8x16xf32>
    %9 = math.exp %8 : vector<8x16xf32>
    %cst_4 = arith.constant dense<0.000000e+00> : vector<8xf32>
    %10 = vector.multi_reduction <add>, %9, %cst_4 [1] : vector<8x16xf32> to vector<8xf32>
    %11 = vector.shape_cast %10 : vector<8xf32> to vector<8x1xf32>
    %12 = math.log %11 : vector<8x1xf32>
    %13 = arith.addf %6, %12 : vector<8x1xf32>
    %14 = tpu.iota {dimensions = array<i32: 1>} : vector<8x16xi32>
    %15 = vector.broadcast %4 : vector<8x1xi32> to vector<8x16xi32>
    %16 = arith.cmpi eq, %14, %15 : vector<8x16xi32>
    %17 = arith.extui %16 : vector<8x16xi1> to vector<8x16xi32>
    %18 = arith.sitofp %17 : vector<8x16xi32> to vector<8x16xf32>
    %19 = arith.mulf %3, %18 : vector<8x16xf32>
    %cst_5 = arith.constant dense<0.000000e+00> : vector<8xf32>
    %20 = vector.multi_reduction <add>, %19, %cst_5 [1] : vector<8x16xf32> to vector<8xf32>
    %21 = vector.shape_cast %20 : vector<8xf32> to vector<8x1xf32>
    %22 = arith.subf %13, %21 : vector<8x1xf32>
    %cst_6 = arith.constant 0.000000e+00 : f32
    %23 = vector.broadcast %cst_6 : f32 to vector<8x1xf32>
    %24 = arith.maximumf %22, %23 : vector<8x1xf32>
    %cst_7 = arith.constant 0.000000e+00 : f32
    %25 = vector.broadcast %cst_7 : f32 to vector<8x1xf32>
    %26 = arith.subf %25, %24 : vector<8x1xf32>
    %27 = math.exp %26 : vector<8x1xf32>
    %cst_8 = arith.constant 1.000000e+00 : f32
    %28 = vector.broadcast %cst_8 : f32 to vector<8x1xf32>
    %29 = arith.subf %28, %27 : vector<8x1xf32>
    %30 = arith.mulf %29, %29 : vector<8x1xf32>
    %31 = arith.mulf %30, %24 : vector<8x1xf32>
    %32 = tpu.iota {dimensions = array<i32: 0>} : vector<8x1xi32>
    %c1_i32 = arith.constant 1 : i32
    %33 = arith.muli %arg0, %c1_i32 : i32
    %34 = arith.addi %33, %arg1 : i32
    %c8_i32 = arith.constant 8 : i32
    %35 = arith.muli %34, %c8_i32 : i32
    %36 = vector.broadcast %35 : i32 to vector<8x1xi32>
    %37 = arith.addi %36, %32 : vector<8x1xi32>
    %c8_i32_9 = arith.constant 8 : i32
    %38 = vector.broadcast %c8_i32_9 : i32 to vector<8x1xi32>
    %39 = arith.cmpi slt, %37, %38 : vector<8x1xi32>
    %cst_10 = arith.constant 0.000000e+00 : f32
    %40 = vector.broadcast %cst_10 : f32 to vector<8x1xf32>
    %41 = arith.select %39, %31, %40 : vector<8x1xi1>, vector<8x1xf32>
    %c0_11 = arith.constant 0 : index
    %c0_12 = arith.constant 0 : index
    %42 = vector.load %arg5[%c0_11, %c0_12] : memref<1x1xf32, #tpu.memory_space<vmem>>, vector<1x1xf32>
    %cst_13 = arith.constant dense<0.000000e+00> : vector<1xf32>
    %43 = vector.multi_reduction <add>, %41, %cst_13 [0] : vector<8x1xf32> to vector<1xf32>
    %44 = vector.shape_cast %43 : vector<1xf32> to vector<1x1xf32>
    %45 = arith.addf %42, %44 : vector<1x1xf32>
    %c0_14 = arith.constant 0 : index
    %c0_15 = arith.constant 0 : index
    %46 = vector.load %arg5[%c0_14, %c0_15] : memref<1x1xf32, #tpu.memory_space<vmem>>, vector<1x1xf32>
    tpu.vector_store %arg5[%c0_14, %c0_15], %45 {strides = array<i32>} : memref<1x1xf32, #tpu.memory_space<vmem>>, vector<1x1xf32>,
    %c0_i32_16 = arith.constant 0 : i32
    %47 = arith.cmpi eq, %arg1, %c0_i32_16 : i32
    %48 = arith.extui %47 : i1 to i32
    %c0_i32_17 = arith.constant 0 : i32
    %49 = arith.cmpi ne, %48, %c0_i32_17 : i32
    scf.if %49 {
      %50 = tpu.iota {dimensions = array<i32: 0>} : vector<8x128xi32>
      %51 = tpu.iota {dimensions = array<i32: 1>} : vector<8x128xi32>
      %c0_i32_18 = arith.constant 0 : i32
      %52 = vector.broadcast %c0_i32_18 : i32 to vector<8x128xi32>
      %53 = arith.cmpi eq, %50, %52 : vector<8x128xi32>
      %c0_i32_19 = arith.constant 0 : i32
      %54 = vector.broadcast %c0_i32_19 : i32 to vector<8x128xi32>
      %55 = arith.cmpi eq, %51, %54 : vector<8x128xi32>
      %56 = arith.andi %53, %55 : vector<8x128xi1>
      %c0_20 = arith.constant 0 : index
      %c0_21 = arith.constant 0 : index
      %57 = vector.load %arg5[%c0_20, %c0_21] : memref<1x1xf32, #tpu.memory_space<vmem>>, vector<1x1xf32>
      %cst_22 = arith.constant 0.000000e+00 : f32
      %58 = vector.shape_cast %57 : vector<1x1xf32> to vector<1x1xf32>
      %59 = vector.broadcast %58 : vector<1x1xf32> to vector<8x128xf32>
      %60 = vector.broadcast %cst_22 : f32 to vector<8x128xf32>
      %61 = arith.select %56, %59, %60 : vector<8x128xi1>, vector<8x128xf32>
      %c0_23 = arith.constant 0 : index
      %c0_24 = arith.constant 0 : index
      %62 = vector.load %arg4[%c0_23, %c0_24] : memref<8x128xf32, #tpu.memory_space<vmem>>, vector<8x128xf32>
      tpu.vector_store %arg4[%c0_23, %c0_24], %61 {strides = array<i32>} : memref<8x128xf32, #tpu.memory_space<vmem>>, vector<8x128xf32>,
    } else {
    }
    return
  }
  func.func @transform_0(%arg0: i32, %arg1: i32) -> (i32, i32) {
    %c1_i32 = arith.constant 1 : i32
    %0 = arith.muli %arg0, %c1_i32 : i32
    %1 = arith.addi %0, %arg1 : i32
    %c0_i32 = arith.constant 0 : i32
    %c0_i32_0 = arith.constant 0 : i32
    return %1, %c0_i32 : i32, i32
  }
  func.func @transform_1(%arg0: i32, %arg1: i32) -> (i32, i32) {
    %c1_i32 = arith.constant 1 : i32
    %0 = arith.muli %arg0, %c1_i32 : i32
    %1 = arith.addi %0, %arg1 : i32
    %c0_i32 = arith.constant 0 : i32
    %c0_i32_0 = arith.constant 0 : i32
    return %1, %c0_i32 : i32, i32
  }
  func.func @transform_2(%arg0: i32, %arg1: i32) -> (i32, i32) {
    %c0_i32 = arith.constant 0 : i32
    %c0_i32_0 = arith.constant 0 : i32
    return %arg0, %c0_i32 : i32, i32
  }
}

</mosaic_0001>

<llo_original>
// kernel: tpu_custom_call.1
$region0: #{tpu_custom_call.1}
  #allocation0 [shape = 'u32[]', space=smem, size = 0x4, offset = 0x4, fixed_abs, tag = 'smem constant byte address 0x4 - core index']
  #allocation1 [shape = 'u32[144,128]{1,0:T(1,128)}', space=vmem, size = 0x12000, scoped, tag = 'internal scratch']
  #allocation2 [shape = 'f32[1,1]{1,0:T(1,128)}', space=vmem, size = 0x200, scoped, tag = 'scratch operand']
  %s0 = inlined_call_operand.vmem [shape: f32[8,16], index: 0, kind: input, shape index: {}]
  %s1 = inlined_call_operand.vmem [shape: s32[8,1], index: 1, kind: input, shape index: {}]
  %s2 = inlined_call_operand.hbm [shape: f32[8,128], index: 2, kind: output, shape index: {}]
  %s3 = sld [smem:[#allocation0]]
  $region26: #{tpu_custom_call.1} parent=0
    _
  %s5 = ssub.s32 1, %s3
  %s6 = scalar_select 0, %s5, %s3
  $region1: #{tpu_custom_call.1} parent=0
    #allocation3 [shape = 'u8[4096]{0}', space=vmem, size = 0x1000, scoped, tag = 'output window, operand 0, single buffered']
    #allocation4 [shape = 's32[1]{0}', space=sflag, size = 0x4, scoped, tag = 'scoped memory for tpu_custom_call.1']
    %7 = vsyncpa [#allocation4], 0
    // Predicated region
    $region2: #{tpu_custom_call.1} parent=1 // pred_check
      _
    $region3: #{tpu_custom_call.1} parent=1 // pred_check_branch
      %9 = sbr.rel (0) target = $region5
    $region4: #{tpu_custom_call.1} parent=1 // pred_region
      %s10 = sadd.s32 0, 0
      %p11 = scmp.lt.s32.totalorder %s10, 0
      %s12 = scalar_select %p11, %s10, 0
      %s13 = smul.addr %s12, 8
      %s14 = scalar_lea.vmem %s0, %s13
      %s15 = sadd.s32 0, 0
    $region5: #{tpu_custom_call.1} parent=1 // pred_fallthru
      _
    // Predicated region
    $region6: #{tpu_custom_call.1} parent=1 // pred_check
      _
    $region7: #{tpu_custom_call.1} parent=1 // pred_check_branch
      %17 = sbr.rel (0) target = $region9
    $region8: #{tpu_custom_call.1} parent=1 // pred_region
      %s18 = sadd.s32 0, 0
      %p19 = scmp.lt.s32.totalorder %s18, 0
      %s20 = scalar_select %p19, %s18, 0
      %s21 = smul.addr %s20, 8
      %s22 = scalar_lea.vmem %s1, %s21
      %s23 = sadd.s32 0, 0
    $region9: #{tpu_custom_call.1} parent=1 // pred_fallthru
      _
    %s24 = sadd.s32 0, 0
    %p25 = scmp.lt.s32.totalorder %s24, 0
    %s26 = scalar_select %p25, %s24, 0
    %s27 = smul.addr %s26, 8
    %s28 = scalar_lea.vmem %s0, %s27
    %s29 = sadd.s32 0, 0
    %p30 = scmp.lt.s32.totalorder %s29, 0
    %s31 = scalar_select %p30, %s29, 0
    %s32 = smul.addr %s31, 8
    %s33 = scalar_lea.vmem %s1, %s32
    %s34 = sadd.s32 0, 0
    %p35 = scmp.lt.s32.totalorder %s34, 0
    %s36 = scalar_select %p35, %s34, 0
    %s37 = smul.addr %s36, 8
    %s38 = scalar_lea.vmem %s0, %s37
    %s39 = sadd.s32 0, 0
    %s40 = sadd.s32 0, 0
    %p41 = scmp.lt.s32.totalorder %s40, 0
    %s42 = scalar_select %p41, %s40, 0
    %s43 = smul.addr %s42, 8
    %s44 = scalar_lea.vmem %s1, %s43
    %s45 = sadd.s32 0, 0
    %p46 = scmp.eq.s32.totalorder 0, 0
    // Predicated region
    $region10: #{tpu_custom_call.1} parent=1 // pred_check
      %p47 = pneg %p46
    $region11: #{tpu_custom_call.1} parent=1 // pred_check_branch
      %49 = sbr.rel (%p47) target = $region13
    $region12: #{tpu_custom_call.1} parent=1 // pred_region
      %vm50 = vcmask 0
      %51 = vst.msk [vmem:[#allocation2] sm:$0x1] %vm50, 0.0
    $region13: #{tpu_custom_call.1} parent=1 // pred_fallthru
      _
    %v52 = vld [vmem:[%s38] sm:$0xff]
    %v53 = vld [vmem:[%s44] sm:$0xff]
    %vm54 = vcmask 130048
    %v55 = vsel %vm54, %v52, -inf
    %56 = vmax.xlane.f32.xlu0 %v55
    %v57 = vpop.xlane.xlu0 %56
    %v58 = vsub.f32 %v52, %v57
    %v59 = vmul.f32 %v58, 1.442695
    %v60 = vpow.pop %v59
    %v61 = vsel %vm54, %v60, 0.0
    %62 = vadd.xlane.f32.xlu0 %v61
    %v63 = vpop.xlane.xlu0 %62
    %v64 = vlog2.pop %v63
    %v65 = vmul.f32 %v64, 0.6931472
    %v66 = vadd.f32 %v57, %v65
    %v67 = vlaneseq
    %v68 = vand.u32 %v67, 127
    %69 = vset.pattern.permute.xlu0 0
    %70 = vperm.xlu0 %69, %v53
    %v71 = vpop.permute.xlu0 %70
    %vm72 = vcmp.eq.s32.totalorder %v68, %v71
    %v73 = vsel %vm72, 1, 0
    %v74 = vcvt.s32.f32 %v73
    %v75 = vmul.f32 %v52, %v74
    %v76 = vsel %vm54, %v75, 0.0
    %77 = vadd.xlane.f32.xlu0 %v76
    %v78 = vpop.xlane.xlu0 %77
    %v79 = vsub.f32 %v66, %v78
    %v80 = vmax.f32 %v79, 0.0
    %v81 = vsub.f32 0.0, %v80
    %v82 = vmul.f32 %v81, 1.442695
    %v83 = vpow.pop %v82
    %v84 = vsub.f32 1.0, %v83
    %v85 = vmul.f32 %v84, %v84
    %v86 = vmul.f32 %v85, %v80
    %v87 = vlaneseq
    %v88 = vshrl.u32 %v87, 7
    %s89 = sadd.s32 0, 0
    %s90 = smul.u32 %s89, 8
    %v91 = vstv %s90
    %v92 = vadd.s32 %v91, %v88
    %vm93 = vcmp.lt.s32.totalorder %v92, 8
    %v94 = vsel %vm93, %v86, 0.0
    %v95 = vld [vmem:[#allocation2] sm:$0x1]
    %v96 = vrot.slane %v94, 4
    %v97 = vadd.f32 %v94, %v96
    %v98 = vrot.slane %v97, 2
    %v99 = vadd.f32 %v97, %v98
    %v100 = vrot.slane %v99, 1
    %v101 = vadd.f32 %v99, %v100
    %v102 = vadd.f32 %v95, %v101
    %vm103 = vcmask 0
    %104 = vst.msk [vmem:[#allocation2] sm:$0x1] %vm103, %v102
    // Predicated region
    $region14: #{tpu_custom_call.1} parent=1 // pred_check
      %p105 = pneg %p46
    $region15: #{tpu_custom_call.1} parent=1 // pred_check_branch
      %107 = sbr.rel (%p105) target = $region17
    $region16: #{tpu_custom_call.1} parent=1 // pred_region
      %vm108 = vcmp.eq.s32.totalorder %v88, 0
      %vm109 = vcmp.eq.s32.totalorder %v68, 0
      %vm110 = vmand %vm108, %vm109
      %v111 = vld [vmem:[#allocation2] sm:$0x1]
      %v113 = vlaneseq
      %v114 = vshrl.u32 %v113, 7
      %v115 = vsub.s32 0, %v114
      %v116 = vrot.slane %v111, %v115
      %117 = vset.pattern.permute.xlu0 0
      %118 = vperm.xlu0 %117, %v116
      %v119 = vpop.permute.xlu0 %118
      %v121 = vsel %vm110, %v119, 0.0
      %122 = vst [vmem:[#allocation3] sm:$0xff] %v121
    $region17: #{tpu_custom_call.1} parent=1 // pred_fallthru
      _
    // Predicated region
    $region18: #{tpu_custom_call.1} parent=1 // pred_check
      _
    $region19: #{tpu_custom_call.1} parent=1 // pred_check_branch
      %124 = sbr.rel (0) target = $region21
    $region20: #{tpu_custom_call.1} parent=1 // pred_region
      %s126 = ssub.s32 128, 128
      %127 = vsyncadd [#allocation4], %s126
      %s129 = sshll.u32 [#allocation3], 4
      %s130 = int_to_ptr.vmem [resolvable:$true] %s129
      %132 = dma.vmem_to_hbm [thread:$0]  %s130, 128, %s2, [#allocation4]
    $region21: #{tpu_custom_call.1} parent=1 // pred_fallthru
      _
    // Predicated region
    $region22: #{tpu_custom_call.1} parent=1 // pred_check
      _
    $region23: #{tpu_custom_call.1} parent=1 // pred_check_branch
      %134 = sbr.rel (0) target = $region25
    $region24: #{tpu_custom_call.1} parent=1 // pred_region
      %135 = dma.done [#allocation4], 128
    $region25: #{tpu_custom_call.1} parent=1 // pred_fallthru
      _
    %136 = vsyncpa [#allocation4], 1

</llo_original>
